<compile_context>
chip_gen: v7x
topology: tpu7x:2x2x1
jax: 0.10.0
libtpu: 0.0.40
codegen_flags: <defaults>
</compile_context>

<pallas_src>
import jax
import jax.numpy as jnp
from jax.experimental import pallas as pl
from jax.experimental.pallas import tpu as pltpu


def _linear_fma_kernel(x_ref, w_ref, b_ref, o_ref):
    # x_ref: (F, TB) VMEM  — features on sublanes, batch on lanes
    # w_ref: (F, 1)  VMEM  — weight column, lane-broadcast against x
    # b_ref: (1, 1)  SMEM  — bias scalar
    # o_ref: (1, TB) VMEM  — lane-dense logits row
    x = x_ref[...].astype(jnp.float32)
    w = w_ref[...].astype(jnp.float32)
    row = jnp.sum(x * w, axis=0, keepdims=True)     # F VPU FMAs + small sublane reduce
    o_ref[...] = (row + b_ref[0, 0]).astype(o_ref.dtype)


def _round_up(x, m):
    return (x + m - 1) // m * m


_VMEM_BUDGET = 16 * 1024 * 1024      # own accounting; vmem_limit_bytes gives extra headroom
_STEP_BYTES_TARGET = 512 * 1024      # >= ~512 KB useful HBM bytes per grid step
_TARGET_STEPS = 8                    # enough independent tiles for v7x's two TensorCores


def _pick_batch_tile(batch, feature_dim):
    """Batch-tile width (lanes).  Multiple of 128 unless batch < 128 (full-extent block)."""
    if batch < 128:
        return batch                              # block == full array dims -> always legal
    f_pad = _round_up(feature_dim, 8)             # sublane padding of the (F, TB) tile
    # double-buffered x tile + (conservatively 8-sublane-padded) double-buffered out row
    bytes_per_lane = (2 * f_pad + 2 * 8) * 4
    tb_vmem = _VMEM_BUDGET // bytes_per_lane
    tb_step = _STEP_BYTES_TARGET // ((feature_dim + 1) * 4)   # useful read+write bytes/step
    tb_split = pl.cdiv(batch, _TARGET_STEPS)                  # keep several tiles for megacore
    tb = min(tb_vmem, max(tb_step, tb_split))
    tb = max(128, (tb // 128) * 128)
    tb = min(tb, (batch // 128) * 128)            # block start/extent always inside the array
    return max(tb, 128)


def logistic_regression_forward(x, weight, bias):
    """Forward of nn.Linear(feature_dim, 1, bias=True).

    x:      (B, F) float32 (or bf16)
    weight: (1, F) float32 (PyTorch nn.Linear weight layout)
    bias:   (1,)   float32
    returns (B, 1) logits (the module applies no sigmoid).
    """
    B, F = x.shape
    out_dtype = x.dtype

    # Batch-on-lanes presentation of x.  Kept in its own dtype through the DMA.
    x_t = x.T                                             # (F, B)
    w_col = weight.reshape(-1, 1).astype(jnp.float32)     # (F, 1)
    bias2d = bias.reshape(1, 1).astype(jnp.float32)       # (1, 1) SMEM scalar

    TB = _pick_batch_tile(B, F)
    num_tiles = pl.cdiv(B, TB)                            # no jnp.pad: boundary block handles the tail

    out_row = pl.pallas_call(
        _linear_fma_kernel,
        out_shape=jax.ShapeDtypeStruct((1, B), out_dtype),
        grid_spec=pltpu.PrefetchScalarGridSpec(
            num_scalar_prefetch=0,
            grid=(num_tiles,),
            in_specs=[
                pl.BlockSpec((F, TB), lambda i: (0, i)),             # lane-dense x tile
                pl.BlockSpec((F, 1), lambda i: (0, 0)),              # resident weight column
                pl.BlockSpec(memory_space=pltpu.MemorySpace.SMEM),   # bias scalar
            ],
            out_specs=pl.BlockSpec((1, TB), lambda i: (0, i)),       # lane-dense output row
        ),
        compiler_params=pltpu.CompilerParams(
            dimension_semantics=("parallel",),        # independent batch tiles (megacore on v7x)
            vmem_limit_bytes=32 * 1024 * 1024,        # same limit is safe on v5e/v6e/v7x
        ),
    )(x_t, w_col, bias2d)

    return out_row.reshape(B, 1)


if __name__ == "__main__":
    # --- Case 1: module defaults (feature_dim=2), small batch — single full-extent tile ---
    feature_dim = 2
    batch = 8

    key = jax.random.PRNGKey(0)
    kx, kw, kb = jax.random.split(key, 3)

    bound = 1.0 / (feature_dim ** 0.5)   # mimic nn.Linear's uniform init range
    weight = jax.random.uniform(kw, (1, feature_dim), jnp.float32, -bound, bound)
    bias = jax.random.uniform(kb, (1,), jnp.float32, -bound, bound)
    x = jax.random.normal(kx, (batch, feature_dim), dtype=jnp.float32)

    out = logistic_regression_forward(x, weight, bias)
    jax.block_until_ready(out)

    ref = jnp.sum(x * weight, axis=-1, keepdims=True) + bias
    assert out.shape == (batch, 1)
    assert jnp.allclose(out, ref, atol=1e-5, rtol=1e-5), "mismatch vs reference (case 1)"

    # --- Case 2: multi-tile grid with a partial boundary block (no wrapper padding) ---
    batch2, feat2 = 300, 8
    k2x, k2w, k2b = jax.random.split(jax.random.PRNGKey(0), 3)
    weight2 = jax.random.uniform(k2w, (1, feat2), jnp.float32, -0.3, 0.3)
    bias2 = jax.random.uniform(k2b, (1,), jnp.float32, -0.3, 0.3)
    x2 = jax.random.normal(k2x, (batch2, feat2), dtype=jnp.float32)

    out2 = logistic_regression_forward(x2, weight2, bias2)
    jax.block_until_ready(out2)

    ref2 = jnp.sum(x2 * weight2, axis=-1, keepdims=True) + bias2
    assert out2.shape == (batch2, 1)
    assert jnp.allclose(out2, ref2, atol=1e-5, rtol=1e-5), "mismatch vs reference (case 2)"

    print("KERNEL_OK")
</pallas_src>

<mosaic_0001>
module attributes {stable_mosaic.version = 11 : i64} {
  func.func @_linear_fma_kernel(%arg0: i32, %arg1: memref<2x8xf32, #tpu.memory_space<vmem>>, %arg2: memref<2x1xf32, #tpu.memory_space<vmem>>, %arg3: memref<1x1xf32, #tpu.memory_space<smem>>, %arg4: memref<1x8xf32, #tpu.memory_space<vmem>>) attributes {dimension_semantics = [#tpu.dimension_semantics<parallel>], iteration_bounds = array<i64: 1>, scalar_prefetch = 0 : i64, scratch_operands = 0 : i64, tpu.core_type = #tpu.core_type<tc>, window_params = [{transform_indices = @transform_0, window_bounds = array<i64: 2, 8>}, {pipeline_mode = #tpu.pipeline_mode<synchronous>, transform_indices = @transform_1, window_bounds = array<i64: 2, 1>}, {transform_indices = @transform_2, window_bounds = array<i64: 1, 1>}, {transform_indices = @transform_3, window_bounds = array<i64: 1, 8>}]} {
    %c0 = arith.constant 0 : index
    %c0_0 = arith.constant 0 : index
    %0 = vector.load %arg1[%c0, %c0_0] : memref<2x8xf32, #tpu.memory_space<vmem>>, vector<2x8xf32>
    %c0_1 = arith.constant 0 : index
    %c0_2 = arith.constant 0 : index
    %1 = vector.load %arg2[%c0_1, %c0_2] : memref<2x1xf32, #tpu.memory_space<vmem>>, vector<2x1xf32>
    %2 = vector.broadcast %1 : vector<2x1xf32> to vector<2x8xf32>
    %3 = arith.mulf %0, %2 : vector<2x8xf32>
    %cst = arith.constant dense<0.000000e+00> : vector<8xf32>
    %4 = vector.multi_reduction <add>, %3, %cst [0] : vector<2x8xf32> to vector<8xf32>
    %5 = vector.shape_cast %4 : vector<8xf32> to vector<1x8xf32>
    %c0_3 = arith.constant 0 : index
    %c0_4 = arith.constant 0 : index
    %6 = memref.load %arg3[%c0_3, %c0_4] : memref<1x1xf32, #tpu.memory_space<smem>>
    %7 = vector.broadcast %6 : f32 to vector<1x8xf32>
    %8 = arith.addf %5, %7 : vector<1x8xf32>
    %c0_5 = arith.constant 0 : index
    %c0_6 = arith.constant 0 : index
    %9 = vector.load %arg4[%c0_5, %c0_6] : memref<1x8xf32, #tpu.memory_space<vmem>>, vector<1x8xf32>
    tpu.vector_store %arg4[%c0_5, %c0_6], %8 {strides = array<i32>} : memref<1x8xf32, #tpu.memory_space<vmem>>, vector<1x8xf32>,
    return
  }
  func.func @transform_0(%arg0: i32) -> (i32, i32) {
    %c0_i32 = arith.constant 0 : i32
    %c0_i32_0 = arith.constant 0 : i32
    return %c0_i32, %arg0 : i32, i32
  }
  func.func @transform_1(%arg0: i32) -> (i32, i32) {
    %c0_i32 = arith.constant 0 : i32
    %c0_i32_0 = arith.constant 0 : i32
    %c0_i32_1 = arith.constant 0 : i32
    return %c0_i32, %c0_i32_0 : i32, i32
  }
  func.func @transform_2(%arg0: i32) -> (i32, i32) {
    %c0_i32 = arith.constant 0 : i32
    %c0_i32_0 = arith.constant 0 : i32
    %c0_i32_1 = arith.constant 0 : i32
    return %c0_i32, %c0_i32_0 : i32, i32
  }
  func.func @transform_3(%arg0: i32) -> (i32, i32) {
    %c0_i32 = arith.constant 0 : i32
    %c0_i32_0 = arith.constant 0 : i32
    return %c0_i32, %arg0 : i32, i32
  }
}

</mosaic_0001>

<llo_original>
// kernel: tpu_custom_call.1
$region0: #{tpu_custom_call.1}
  #allocation0 [shape = 'u32[]', space=smem, size = 0x4, offset = 0x4, fixed_abs, tag = 'smem constant byte address 0x4 - core index']
  #allocation1 [shape = 'u32[144,128]{1,0:T(1,128)}', space=vmem, size = 0x12000, scoped, tag = 'internal scratch']
  #allocation2 [shape = 'f32[1,1]{1,0:T(1,128)S(6)}', space=smem, size = 0x200, scoped, tag = 'scoped memory for tpu_custom_call.1']
  %s0 = inlined_call_operand.vmem [shape: f32[2,8], index: 0, kind: input, shape index: {}]
  %s1 = inlined_call_operand.vmem [shape: f32[2,1], index: 1, kind: input, shape index: {}]
  %s2 = inlined_call_operand.<no memory space> [shape: f32[1,1], index: 2, kind: input, shape index: {}]
  %s3 = inlined_call_operand.hbm [shape: f32[1,8], index: 3, kind: output, shape index: {}]
  %s4 = sld [smem:[#allocation0]]
  $region22: #{tpu_custom_call.1} parent=0
    _
  %s6 = ssub.s32 1, %s4
  %s7 = scalar_select 0, %s6, %s4
  %8 = sst [smem:[#allocation2]] %s2
  $region1: #{tpu_custom_call.1} parent=0
    #allocation3 [shape = 'u8[512]{0}', space=vmem, size = 0x400, scoped, tag = 'output window, operand 0, single buffered']
    #allocation4 [shape = 's32[1]{0}', space=sflag, size = 0x4, scoped, tag = 'scoped memory for tpu_custom_call.1']
    %9 = vsyncpa [#allocation4], 0
    // Predicated region
    $region2: #{tpu_custom_call.1} parent=1 // pred_check
      _
    $region3: #{tpu_custom_call.1} parent=1 // pred_check_branch
      %11 = sbr.rel (0) target = $region5
    $region4: #{tpu_custom_call.1} parent=1 // pred_region
      _
    $region5: #{tpu_custom_call.1} parent=1 // pred_fallthru
      _
    // Predicated region
    $region6: #{tpu_custom_call.1} parent=1 // pred_check
      _
    $region7: #{tpu_custom_call.1} parent=1 // pred_check_branch
      %13 = sbr.rel (0) target = $region9
    $region8: #{tpu_custom_call.1} parent=1 // pred_region
      _
    $region9: #{tpu_custom_call.1} parent=1 // pred_fallthru
      _
    // Predicated region
    $region10: #{tpu_custom_call.1} parent=1 // pred_check
      _
    $region11: #{tpu_custom_call.1} parent=1 // pred_check_branch
      %15 = sbr.rel (0) target = $region13
    $region12: #{tpu_custom_call.1} parent=1 // pred_region
      _
    $region13: #{tpu_custom_call.1} parent=1 // pred_fallthru
      _
    %v16 = vld [vmem:[%s0] sm:$0x3]
    %v17 = vld [vmem:[%s1] sm:$0x3]
    %19 = vset.pattern.permute.xlu0 0
    %20 = vperm.xlu0 %19, %v17
    %v21 = vpop.permute.xlu0 %20
    %v23 = vmul.f32 %v16, %v21
    %vm24 = vcmask 58368
    %v25 = vsel %vm24, %v23, 0.0
    %v26 = vrot.slane %v25, 4
    %v27 = vadd.f32 %v25, %v26
    %v28 = vrot.slane %v27, 2
    %v29 = vadd.f32 %v27, %v28
    %v30 = vrot.slane %v29, 1
    %v31 = vadd.f32 %v29, %v30
    %s32 = sld [smem:[#allocation2]]
    %v33 = vstv %s32
    %v34 = vadd.f32 %v31, %v33
    %vm35 = vcmask 57344
    %36 = vst.msk [vmem:[#allocation3] sm:$0x1] %vm35, %v34
    // Predicated region
    $region14: #{tpu_custom_call.1} parent=1 // pred_check
      _
    $region15: #{tpu_custom_call.1} parent=1 // pred_check_branch
      %38 = sbr.rel (0) target = $region17
    $region16: #{tpu_custom_call.1} parent=1 // pred_region
      %s40 = ssub.s32 16, 16
      %41 = vsyncadd [#allocation4], %s40
      %s43 = sshll.u32 [#allocation3], 4
      %s44 = int_to_ptr.vmem [resolvable:$true] %s43
      %46 = dma.vmem_to_hbm [thread:$0]  %s44, 16, %s3, [#allocation4]
    $region17: #{tpu_custom_call.1} parent=1 // pred_fallthru
      _
    // Predicated region
    $region18: #{tpu_custom_call.1} parent=1 // pred_check
      _
    $region19: #{tpu_custom_call.1} parent=1 // pred_check_branch
      %48 = sbr.rel (0) target = $region21
    $region20: #{tpu_custom_call.1} parent=1 // pred_region
      %49 = dma.done [#allocation4], 16
    $region21: #{tpu_custom_call.1} parent=1 // pred_fallthru
      _
    %50 = vsyncpa [#allocation4], 1

</llo_original>
